<compile_context>
chip_gen: v5e
topology: v5e:2x2
jax: 0.10.0
libtpu: 0.0.40
codegen_flags: <defaults>
</compile_context>

<pallas_src>
import jax
import jax.numpy as jnp
from jax.experimental import pallas as pl
from jax.experimental.pallas import tpu as pltpu


# ---- model config (deterministic, scaled-down feature sizes) ----
D1, D2, D3 = 256, 128, 384
DIN = D1 + D2 + D3       # 768, concatenated input width
SIZE = D1 + D2           # deterministic stand-in for the undefined `size`
NTOT = D1 + D2 + D3 + SIZE   # 1408, final output width


def _fused_kernel(x_ref, w1_ref, w2_ref, w3_ref, b_ref, o_ref):
    # x_ref  : (TM, 768)   concatenated [x1 | x2 | x3] block
    # w*_ref : (K, N)      pre-transposed weights (VMEM-resident across grid)
    # b_ref  : (1, 768)    concatenated [b1 | b2 | b3] (VMEM-resident)
    # o_ref  : (TM, 1408)  final fused output block  [ l1 | l2 | l3 | l1 | l2 ]
    x1 = x_ref[:, 0:D1]                     # static 128-aligned slices: views
    x2 = x_ref[:, D1:D1 + D2]
    x3 = x_ref[:, D1 + D2:DIN]

    l1 = jnp.dot(x1, w1_ref[...], preferred_element_type=jnp.float32) \
        + b_ref[:, 0:D1]
    l2 = jnp.dot(x2, w2_ref[...], preferred_element_type=jnp.float32) \
        + b_ref[:, D1:D1 + D2]
    l3 = jnp.dot(x3, w3_ref[...], preferred_element_type=jnp.float32) \
        + b_ref[:, D1 + D2:DIN]

    # v1 = cat([l1, l2, l3]); v3 = v1[:, 0:SIZE] = [l1 | l2]; v4 = cat([v1, v3])
    row = jnp.concatenate([l1, l2, l3, l1, l2], axis=1)
    o_ref[...] = row.astype(o_ref.dtype)    # one unmasked lane-dense store


def _pick_tm(B):
    # Largest convenient batch tile that divides B; multiple of 8 (f32 sublane)
    # when possible. Falls back to the full batch (legal: block == full dim).
    for tm in (512, 256, 128, 64, 32, 16, 8):
        if B % tm == 0:
            return tm
    return B


def _fused_forward(x_cat, w1t, w2t, w3t, b_cat):
    B = x_cat.shape[0]
    tm = _pick_tm(B)
    grid = (B // tm,)

    flops = 2 * B * (D1 * D1 + D2 * D2 + D3 * D3)
    bytes_accessed = 4 * (
        B * DIN                                  # input block stream
        + (D1 * D1 + D2 * D2 + D3 * D3)          # weights (read once, resident)
        + DIN                                    # bias
        + B * NTOT                               # output
    )

    return pl.pallas_call(
        _fused_kernel,
        out_shape=jax.ShapeDtypeStruct((B, NTOT), x_cat.dtype),
        grid_spec=pltpu.PrefetchScalarGridSpec(
            num_scalar_prefetch=0,
            grid=grid,
            in_specs=[
                pl.BlockSpec((tm, DIN), lambda i: (i, 0)),    # activations
                pl.BlockSpec((D1, D1), lambda i: (0, 0)),     # w1t, resident
                pl.BlockSpec((D2, D2), lambda i: (0, 0)),     # w2t, resident
                pl.BlockSpec((D3, D3), lambda i: (0, 0)),     # w3t, resident
                pl.BlockSpec((1, DIN), lambda i: (0, 0)),     # bias, resident
            ],
            out_specs=pl.BlockSpec((tm, NTOT), lambda i: (i, 0)),
        ),
        compiler_params=pltpu.CompilerParams(
            dimension_semantics=("parallel",),        # shard batch across TCs (v7x)
            vmem_limit_bytes=32 * 1024 * 1024,        # fits v7x scoped VMEM w/ headroom
        ),
        cost_estimate=pl.CostEstimate(
            flops=flops, transcendentals=0, bytes_accessed=bytes_accessed),
    )(x_cat, w1t, w2t, w3t, b_cat)


def init_params(key):
    # Weights are created already transposed to (in, out) and the biases are
    # stored concatenated, so `forward` does zero per-call layout work.
    ks = jax.random.split(key, 6)

    def lin_t(kw, kb, d):
        bound = 1.0 / jnp.sqrt(d)
        wt = jax.random.uniform(kw, (d, d), jnp.float32, -bound, bound)  # (K, N)
        b = jax.random.uniform(kb, (d,), jnp.float32, -bound, bound)
        return wt, b

    w1t, b1 = lin_t(ks[0], ks[1], D1)
    w2t, b2 = lin_t(ks[2], ks[3], D2)
    w3t, b3 = lin_t(ks[4], ks[5], D3)
    b_cat = jnp.concatenate([b1, b2, b3]).reshape(1, DIN)
    return {"w1t": w1t, "w2t": w2t, "w3t": w3t, "b": b_cat}


@jax.jit
def forward(params, x1, x2, x3, x4):
    # x4 unused, as in the original module.
    x_cat = jnp.concatenate([x1, x2, x3], axis=1)   # tiny (B, 768) concat
    return _fused_forward(
        x_cat, params["w1t"], params["w2t"], params["w3t"], params["b"])


if __name__ == "__main__":
    key = jax.random.PRNGKey(0)
    kp, k1, k2, k3, k4 = jax.random.split(key, 5)
    params = init_params(kp)

    B = 2
    x1 = jax.random.normal(k1, (B, D1), jnp.float32)
    x2 = jax.random.normal(k2, (B, D2), jnp.float32)
    x3 = jax.random.normal(k3, (B, D3), jnp.float32)
    x4 = jax.random.normal(k4, (B, D1), jnp.float32)  # unused, as in the module

    out = forward(params, x1, x2, x3, x4)
    jax.block_until_ready(out)

    # sanity check against plain JAX reference
    b1 = params["b"][0, 0:D1]
    b2 = params["b"][0, D1:D1 + D2]
    b3 = params["b"][0, D1 + D2:DIN]
    r1 = x1 @ params["w1t"] + b1
    r2 = x2 @ params["w2t"] + b2
    r3 = x3 @ params["w3t"] + b3
    rv1 = jnp.concatenate([r1, r2, r3], axis=1)
    ref = jnp.concatenate([rv1, rv1[:, 0:SIZE]], axis=1)
    assert out.shape == (B, NTOT)
    assert jnp.allclose(out, ref, atol=1e-4, rtol=1e-4)

    print("KERNEL_OK")
</pallas_src>

<mosaic_0001>
module attributes {stable_mosaic.version = 11 : i64} {
  func.func @_fused_kernel(%arg0: i32, %arg1: memref<2x768xf32, #tpu.memory_space<vmem>>, %arg2: memref<256x256xf32, #tpu.memory_space<vmem>>, %arg3: memref<128x128xf32, #tpu.memory_space<vmem>>, %arg4: memref<384x384xf32, #tpu.memory_space<vmem>>, %arg5: memref<1x768xf32, #tpu.memory_space<vmem>>, %arg6: memref<2x1152xf32, #tpu.memory_space<vmem>>) attributes {dimension_semantics = [#tpu.dimension_semantics<parallel>], iteration_bounds = array<i64: 1>, scalar_prefetch = 0 : i64, scratch_operands = 0 : i64, tpu.core_type = #tpu.core_type<tc>, window_params = [{transform_indices = @transform_0, window_bounds = array<i64: 2, 768>}, {pipeline_mode = #tpu.pipeline_mode<synchronous>, transform_indices = @transform_1, window_bounds = array<i64: 256, 256>}, {pipeline_mode = #tpu.pipeline_mode<synchronous>, transform_indices = @transform_2, window_bounds = array<i64: 128, 128>}, {pipeline_mode = #tpu.pipeline_mode<synchronous>, transform_indices = @transform_3, window_bounds = array<i64: 384, 384>}, {pipeline_mode = #tpu.pipeline_mode<synchronous>, transform_indices = @transform_4, window_bounds = array<i64: 1, 768>}, {transform_indices = @transform_5, window_bounds = array<i64: 2, 1152>}]} {
    %c0 = arith.constant 0 : index
    %c0_0 = arith.constant 0 : index
    %0 = vector.load %arg1[%c0, %c0_0] : memref<2x768xf32, #tpu.memory_space<vmem>>, vector<2x256xf32>
    %c0_1 = arith.constant 0 : index
    %c256 = arith.constant 256 : index
    %1 = vector.load %arg1[%c0_1, %c256] : memref<2x768xf32, #tpu.memory_space<vmem>>, vector<2x128xf32>
    %c0_2 = arith.constant 0 : index
    %c384 = arith.constant 384 : index
    %2 = vector.load %arg1[%c0_2, %c384] : memref<2x768xf32, #tpu.memory_space<vmem>>, vector<2x384xf32>
    %c0_3 = arith.constant 0 : index
    %c0_4 = arith.constant 0 : index
    %3 = vector.load %arg2[%c0_3, %c0_4] : memref<256x256xf32, #tpu.memory_space<vmem>>, vector<256x256xf32>
    %cst = arith.constant dense<0.000000e+00> : vector<2x256xf32>
    %4 = tpu.matmul %0, %3, %cst {dimension_numbers = #tpu.dot_dimension_numbers<[1], [0], [0], [1], [0, 0, 1, 1], [], []>} : vector<2x256xf32>, vector<256x256xf32>, vector<2x256xf32> -> vector<2x256xf32>
    %c0_5 = arith.constant 0 : index
    %c0_6 = arith.constant 0 : index
    %5 = vector.load %arg5[%c0_5, %c0_6] : memref<1x768xf32, #tpu.memory_space<vmem>>, vector<1x256xf32>
    %6 = vector.broadcast %5 : vector<1x256xf32> to vector<2x256xf32>
    %7 = arith.addf %4, %6 : vector<2x256xf32>
    %c0_7 = arith.constant 0 : index
    %c0_8 = arith.constant 0 : index
    %8 = vector.load %arg3[%c0_7, %c0_8] : memref<128x128xf32, #tpu.memory_space<vmem>>, vector<128x128xf32>
    %cst_9 = arith.constant dense<0.000000e+00> : vector<2x128xf32>
    %9 = tpu.matmul %1, %8, %cst_9 {dimension_numbers = #tpu.dot_dimension_numbers<[1], [0], [0], [1], [0, 0, 1, 1], [], []>} : vector<2x128xf32>, vector<128x128xf32>, vector<2x128xf32> -> vector<2x128xf32>
    %c0_10 = arith.constant 0 : index
    %c256_11 = arith.constant 256 : index
    %10 = vector.load %arg5[%c0_10, %c256_11] : memref<1x768xf32, #tpu.memory_space<vmem>>, vector<1x128xf32>
    %11 = vector.broadcast %10 : vector<1x128xf32> to vector<2x128xf32>
    %12 = arith.addf %9, %11 : vector<2x128xf32>
    %c0_12 = arith.constant 0 : index
    %c0_13 = arith.constant 0 : index
    %13 = vector.load %arg4[%c0_12, %c0_13] : memref<384x384xf32, #tpu.memory_space<vmem>>, vector<384x384xf32>
    %cst_14 = arith.constant dense<0.000000e+00> : vector<2x384xf32>
    %14 = tpu.matmul %2, %13, %cst_14 {dimension_numbers = #tpu.dot_dimension_numbers<[1], [0], [0], [1], [0, 0, 1, 1], [], []>} : vector<2x384xf32>, vector<384x384xf32>, vector<2x384xf32> -> vector<2x384xf32>
    %c0_15 = arith.constant 0 : index
    %c384_16 = arith.constant 384 : index
    %15 = vector.load %arg5[%c0_15, %c384_16] : memref<1x768xf32, #tpu.memory_space<vmem>>, vector<1x384xf32>
    %16 = vector.broadcast %15 : vector<1x384xf32> to vector<2x384xf32>
    %17 = arith.addf %14, %16 : vector<2x384xf32>
    %18 = tpu.concatenate %7, %12, %17, %7, %12 in 1 : vector<2x256xf32>, vector<2x128xf32>, vector<2x384xf32>, vector<2x256xf32>, vector<2x128xf32> -> vector<2x1152xf32>
    %c0_17 = arith.constant 0 : index
    %c0_18 = arith.constant 0 : index
    %19 = vector.load %arg6[%c0_17, %c0_18] : memref<2x1152xf32, #tpu.memory_space<vmem>>, vector<2x1152xf32>
    tpu.vector_store %arg6[%c0_17, %c0_18], %18 {strides = array<i32>} : memref<2x1152xf32, #tpu.memory_space<vmem>>, vector<2x1152xf32>,
    return
  }
  func.func @transform_0(%arg0: i32) -> (i32, i32) {
    %c0_i32 = arith.constant 0 : i32
    %c0_i32_0 = arith.constant 0 : i32
    return %arg0, %c0_i32 : i32, i32
  }
  func.func @transform_1(%arg0: i32) -> (i32, i32) {
    %c0_i32 = arith.constant 0 : i32
    %c0_i32_0 = arith.constant 0 : i32
    %c0_i32_1 = arith.constant 0 : i32
    return %c0_i32, %c0_i32_0 : i32, i32
  }
  func.func @transform_2(%arg0: i32) -> (i32, i32) {
    %c0_i32 = arith.constant 0 : i32
    %c0_i32_0 = arith.constant 0 : i32
    %c0_i32_1 = arith.constant 0 : i32
    return %c0_i32, %c0_i32_0 : i32, i32
  }
  func.func @transform_3(%arg0: i32) -> (i32, i32) {
    %c0_i32 = arith.constant 0 : i32
    %c0_i32_0 = arith.constant 0 : i32
    %c0_i32_1 = arith.constant 0 : i32
    return %c0_i32, %c0_i32_0 : i32, i32
  }
  func.func @transform_4(%arg0: i32) -> (i32, i32) {
    %c0_i32 = arith.constant 0 : i32
    %c0_i32_0 = arith.constant 0 : i32
    %c0_i32_1 = arith.constant 0 : i32
    return %c0_i32, %c0_i32_0 : i32, i32
  }
  func.func @transform_5(%arg0: i32) -> (i32, i32) {
    %c0_i32 = arith.constant 0 : i32
    %c0_i32_0 = arith.constant 0 : i32
    return %arg0, %c0_i32 : i32, i32
  }
}

</mosaic_0001>

<llo_original>
// kernel: forward.1
$region0: #{forward.1}
  #allocation0 [shape = 'u32[]', space=smem, size = 0x4, offset = 0x4, fixed_abs, tag = 'smem constant byte address 0x4 - core index']
  #allocation1 [shape = 'u32[72,128]{1,0:T(1,128)}', space=vmem, size = 0x9000, scoped, tag = 'internal scratch']
  %s0 = inlined_call_operand.vmem [shape: f32[2,768], index: 0, kind: input, shape index: {}]
  %s1 = inlined_call_operand.hbm [shape: f32[256,256], index: 1, kind: input, shape index: {}]
  %s2 = inlined_call_operand.hbm [shape: f32[128,128], index: 2, kind: input, shape index: {}]
  %s3 = inlined_call_operand.hbm [shape: f32[384,384], index: 3, kind: input, shape index: {}]
  %s4 = inlined_call_operand.vmem [shape: f32[1,768], index: 4, kind: input, shape index: {}]
  %s5 = inlined_call_operand.hbm [shape: f32[2,1152], index: 5, kind: output, shape index: {}]
  %s6 = sld [smem:[#allocation0]]
  $region42: #{forward.1} parent=0
    _
  %s8 = ssub.s32 1, %s6
  %s9 = scalar_select 0, %s8, %s6
  $region1: #{forward.1} parent=0
    #allocation2 [shape = 'u8[262144]{0}', space=vmem, size = 0x40000, scoped, tag = 'input window, operand 1, single buffered']
    #allocation3 [shape = 's32[1]{0}', space=sflag, size = 0x4, scoped, tag = 'scoped memory for forward.1']
    #allocation4 [shape = 's32[1]{0}', space=sflag, size = 0x4, scoped, tag = 'scoped memory for forward.1']
    #allocation5 [shape = 'u8[65536]{0}', space=vmem, size = 0x10000, scoped, tag = 'input window, operand 2, single buffered']
    #allocation6 [shape = 's32[1]{0}', space=sflag, size = 0x4, scoped, tag = 'scoped memory for forward.1']
    #allocation7 [shape = 'u8[589824]{0}', space=vmem, size = 0x90000, scoped, tag = 'input window, operand 3, single buffered']
    #allocation8 [shape = 'u8[9216]{0}', space=vmem, size = 0x2400, scoped, tag = 'output window, operand 0, single buffered']
    %10 = vsyncpa [#allocation3], 0
    %11 = vsyncpa [#allocation6], 0
    %12 = vsyncpa [#allocation4], 0
    // Predicated region
    $region2: #{forward.1} parent=1 // pred_check
      _
    $region3: #{forward.1} parent=1 // pred_check_branch
      %14 = sbr.rel (0) target = $region5
    $region4: #{forward.1} parent=1 // pred_region
      _
    $region5: #{forward.1} parent=1 // pred_fallthru
      _
    // Predicated region
    $region6: #{forward.1} parent=1 // pred_check
      _
    $region7: #{forward.1} parent=1 // pred_check_branch
      %16 = sbr.rel (0) target = $region9
    $region8: #{forward.1} parent=1 // pred_region
      %18 = vsyncadd [#allocation3], 0
      %s19 = sshll.u32 %s1, 4
      %s20 = int_to_ptr.hbm [resolvable:$true] %s19
      %s21 = sshll.u32 [#allocation2], 4
      %s22 = int_to_ptr.vmem [resolvable:$true] %s21
      %27 = dma.hbm_to_vmem [thread:$0]  %s20, 8192, %s22, [#allocation3], 256, 256, 16
    $region9: #{forward.1} parent=1 // pred_fallthru
      _
    // Predicated region
    $region10: #{forward.1} parent=1 // pred_check
      _
    $region11: #{forward.1} parent=1 // pred_check_branch
      %29 = sbr.rel (0) target = $region13
    $region12: #{forward.1} parent=1 // pred_region
      %31 = vsyncadd [#allocation6], 0
      %s32 = sshll.u32 %s2, 4
      %s33 = int_to_ptr.hbm [resolvable:$true] %s32
      %s34 = sshll.u32 [#allocation5], 4
      %s35 = int_to_ptr.vmem [resolvable:$true] %s34
      %40 = dma.hbm_to_vmem [thread:$0]  %s33, 2048, %s35, [#allocation6], 128, 128, 8
    $region13: #{forward.1} parent=1 // pred_fallthru
      _
    // Predicated region
    $region14: #{forward.1} parent=1 // pred_check
      _
    $region15: #{forward.1} parent=1 // pred_check_branch
      %42 = sbr.rel (0) target = $region17
    $region16: #{forward.1} parent=1 // pred_region
      %44 = vsyncadd [#allocation6], 0
      %s45 = sshll.u32 %s3, 4
      %s46 = int_to_ptr.hbm [resolvable:$true] %s45
      %s47 = sshll.u32 [#allocation7], 4
      %s48 = int_to_ptr.vmem [resolvable:$true] %s47
      %53 = dma.hbm_to_vmem [thread:$0]  %s46, 18432, %s48, [#allocation6], 384, 384, 24
    $region17: #{forward.1} parent=1 // pred_fallthru
      _
    // Predicated region
    $region18: #{forward.1} parent=1 // pred_check
      _
    $region19: #{forward.1} parent=1 // pred_check_branch
      %55 = sbr.rel (0) target = $region21
    $region20: #{forward.1} parent=1 // pred_region
      _
    $region21: #{forward.1} parent=1 // pred_fallthru
      _
    // Predicated region
    $region22: #{forward.1} parent=1 // pred_check
      _
    $region23: #{forward.1} parent=1 // pred_check_branch
      %57 = sbr.rel (0) target = $region25
    $region24: #{forward.1} parent=1 // pred_region
      %59 = dma.done [#allocation3], 8192
    $region25: #{forward.1} parent=1 // pred_fallthru
      _
    // Predicated region
    $region26: #{forward.1} parent=1 // pred_check
      _
    $region27: #{forward.1} parent=1 // pred_check_branch
      %61 = sbr.rel (0) target = $region29
    $region28: #{forward.1} parent=1 // pred_region
      %63 = dma.done [#allocation6], 2048
    $region29: #{forward.1} parent=1 // pred_fallthru
      _
    // Predicated region
    $region30: #{forward.1} parent=1 // pred_check
      _
    $region31: #{forward.1} parent=1 // pred_check_branch
      %65 = sbr.rel (0) target = $region33
    $region32: #{forward.1} parent=1 // pred_region
      %67 = dma.done [#allocation6], 18432
    $region33: #{forward.1} parent=1 // pred_fallthru
      _
    %v68 = vld [vmem:[%s0] sm:$0xf]
    %v69 = vld [vmem:[%s0 + $0x4] sm:$0x3]
    %v70 = vld [vmem:[%s0 + $0x6] sm:$0x3f]
    %v71 = vld [vmem:[#allocation2] sm:$0xff]
    %v72 = vld [vmem:[#allocation2 + $0x8] sm:$0xff]
    %v73 = vld [vmem:[#allocation2 + $0x10] sm:$0xff]
    %v74 = vld [vmem:[#allocation2 + $0x18] sm:$0xff]
    %v75 = vld [vmem:[#allocation2 + $0x20] sm:$0xff]
    %v76 = vld [vmem:[#allocation2 + $0x28] sm:$0xff]
    %v77 = vld [vmem:[#allocation2 + $0x30] sm:$0xff]
    %v78 = vld [vmem:[#allocation2 + $0x38] sm:$0xff]
    %v79 = vld [vmem:[#allocation2 + $0x40] sm:$0xff]
    %v80 = vld [vmem:[#allocation2 + $0x48] sm:$0xff]
    %v81 = vld [vmem:[#allocation2 + $0x50] sm:$0xff]
    %v82 = vld [vmem:[#allocation2 + $0x58] sm:$0xff]
    %v83 = vld [vmem:[#allocation2 + $0x60] sm:$0xff]
    %v84 = vld [vmem:[#allocation2 + $0x68] sm:$0xff]
    %v85 = vld [vmem:[#allocation2 + $0x70] sm:$0xff]
    %v86 = vld [vmem:[#allocation2 + $0x78] sm:$0xff]
    %v87 = vld [vmem:[#allocation2 + $0x80] sm:$0xff]
    %v88 = vld [vmem:[#allocation2 + $0x88] sm:$0xff]
    %v89 = vld [vmem:[#allocation2 + $0x90] sm:$0xff]
    %v90 = vld [vmem:[#allocation2 + $0x98] sm:$0xff]
    %v91 = vld [vmem:[#allocation2 + $0xa0] sm:$0xff]
    %v92 = vld [vmem:[#allocation2 + $0xa8] sm:$0xff]
    %v93 = vld [vmem:[#allocation2 + $0xb0] sm:$0xff]
    %v94 = vld [vmem:[#allocation2 + $0xb8] sm:$0xff]
    %v95 = vld [vmem:[#allocation2 + $0xc0] sm:$0xff]
    %v96 = vld [vmem:[#allocation2 + $0xc8] sm:$0xff]
    %v97 = vld [vmem:[#allocation2 + $0xd0] sm:$0xff]
    %v98 = vld [vmem:[#allocation2 + $0xd8] sm:$0xff]
    %v99 = vld [vmem:[#allocation2 + $0xe0] sm:$0xff]
    %v100 = vld [vmem:[#allocation2 + $0xe8] sm:$0xff]
    %v101 = vld [vmem:[#allocation2 + $0xf0] sm:$0xff]
    %v102 = vld [vmem:[#allocation2 + $0xf8] sm:$0xff]
    %v103 = vld [vmem:[#allocation2 + $0x100] sm:$0xff]
    %v104 = vld [vmem:[#allocation2 + $0x108] sm:$0xff]
    %v105 = vld [vmem:[#allocation2 + $0x110] sm:$0xff]
    %v106 = vld [vmem:[#allocation2 + $0x118] sm:$0xff]
    %v107 = vld [vmem:[#allocation2 + $0x120] sm:$0xff]
    %v108 = vld [vmem:[#allocation2 + $0x128] sm:$0xff]
    %v109 = vld [vmem:[#allocation2 + $0x130] sm:$0xff]
    %v110 = vld [vmem:[#allocation2 + $0x138] sm:$0xff]
    %v111 = vld [vmem:[#allocation2 + $0x140] sm:$0xff]
    %v112 = vld [vmem:[#allocation2 + $0x148] sm:$0xff]
    %v113 = vld [vmem:[#allocation2 + $0x150] sm:$0xff]
    %v114 = vld [vmem:[#allocation2 + $0x158] sm:$0xff]
    %v115 = vld [vmem:[#allocation2 + $0x160] sm:$0xff]
    %v116 = vld [vmem:[#allocation2 + $0x168] sm:$0xff]
    %v117 = vld [vmem:[#allocation2 + $0x170] sm:$0xff]
    %v118 = vld [vmem:[#allocation2 + $0x178] sm:$0xff]
    %v119 = vld [vmem:[#allocation2 + $0x180] sm:$0xff]
    %v120 = vld [vmem:[#allocation2 + $0x188] sm:$0xff]
    %v121 = vld [vmem:[#allocation2 + $0x190] sm:$0xff]
    %v122 = vld [vmem:[#allocation2 + $0x198] sm:$0xff]
    %v123 = vld [vmem:[#allocation2 + $0x1a0] sm:$0xff]
    %v124 = vld [vmem:[#allocation2 + $0x1a8] sm:$0xff]
    %v125 = vld [vmem:[#allocation2 + $0x1b0] sm:$0xff]
    %v126 = vld [vmem:[#allocation2 + $0x1b8] sm:$0xff]
    %v127 = vld [vmem:[#allocation2 + $0x1c0] sm:$0xff]
    %v128 = vld [vmem:[#allocation2 + $0x1c8] sm:$0xff]
    %v129 = vld [vmem:[#allocation2 + $0x1d0] sm:$0xff]
    %v130 = vld [vmem:[#allocation2 + $0x1d8] sm:$0xff]
    %v131 = vld [vmem:[#allocation2 + $0x1e0] sm:$0xff]
    %v132 = vld [vmem:[#allocation2 + $0x1e8] sm:$0xff]
    %v133 = vld [vmem:[#allocation2 + $0x1f0] sm:$0xff]
    %v134 = vld [vmem:[#allocation2 + $0x1f8] sm:$0xff]
    %v135 = vld [vmem:[%s4] sm:$0x3]
    %v137 = vperm.slane %v135, 0
    %v138 = vperm.slane %v135, 1
    %142 = vst [vmem:[#allocation1] ss:$4 sm:$0xff] %v68
    %v143 = vld.sshfl [vmem:[#allocation1] sm:$0xff pattern:$0x73625140]
    %v144 = vld.sshfl [vmem:[#allocation1 + $0x8] sm:$0xff pattern:$0x73625140]
    %147 = vmatpush.msra.mxu0 %v101
    %148 = vmatpush.msra.mxu0 %v99
    %149 = vmatpush.msra.mxu0 %v97
    %150 = vmatpush.msra.mxu0 %v95
    %151 = vmatpush.msra.mxu0 %v93
    %152 = vmatpush.msra.mxu0 %v91
    %153 = vmatpush.msra.mxu0 %v89
    %154 = vmatpush.msra.mxu0 %v87
    %155 = vmatpush.msra.mxu0 %v85
    %156 = vmatpush.msra.mxu0 %v83
    %157 = vmatpush.msra.mxu0 %v81
    %158 = vmatpush.msra.mxu0 %v79
    %159 = vmatpush.msra.mxu0 %v77
    %160 = vmatpush.msra.mxu0 %v75
    %161 = vmatpush.msra.mxu0 %v73
    %162 = vmatpush.msra.mxu0 %v71
    %163 = vmatmul.f32.gmra.mxu0 %v143
    %v164 = vpop.f32.mrf.mxu0
    %v165 = vadd.f32 %v137, %v164
    %166 = vdwg.mxu0
    %167 = vmatpush.msra.mxu0 %v133
    %168 = vmatpush.msra.mxu0 %v131
    %169 = vmatpush.msra.mxu0 %v129
    %170 = vmatpush.msra.mxu0 %v127
    %171 = vmatpush.msra.mxu0 %v125
    %172 = vmatpush.msra.mxu0 %v123
    %173 = vmatpush.msra.mxu0 %v121
    %174 = vmatpush.msra.mxu0 %v119
    %175 = vmatpush.msra.mxu0 %v117
    %176 = vmatpush.msra.mxu0 %v115
    %177 = vmatpush.msra.mxu0 %v113
    %178 = vmatpush.msra.mxu0 %v111
    %179 = vmatpush.msra.mxu0 %v109
    %180 = vmatpush.msra.mxu0 %v107
    %181 = vmatpush.msra.mxu0 %v105
    %182 = vmatpush.msra.mxu0 %v103
    %183 = vmatmul.f32.gmra.mxu0 %v144
    %v184 = vpop.f32.mrf.mxu0
    %v185 = vadd.f32 %v165, %v184
    %186 = vdwg.mxu0
    %187 = vmatpush.msra.mxu0 %v102
    %188 = vmatpush.msra.mxu0 %v100
    %189 = vmatpush.msra.mxu0 %v98
    %190 = vmatpush.msra.mxu0 %v96
    %191 = vmatpush.msra.mxu0 %v94
    %192 = vmatpush.msra.mxu0 %v92
    %193 = vmatpush.msra.mxu0 %v90
    %194 = vmatpush.msra.mxu0 %v88
    %195 = vmatpush.msra.mxu0 %v86
    %196 = vmatpush.msra.mxu0 %v84
    %197 = vmatpush.msra.mxu0 %v82
    %198 = vmatpush.msra.mxu0 %v80
    %199 = vmatpush.msra.mxu0 %v78
    %200 = vmatpush.msra.mxu0 %v76
    %201 = vmatpush.msra.mxu0 %v74
    %202 = vmatpush.msra.mxu0 %v72
    %203 = vmatmul.f32.gmra.mxu0 %v143
    %v204 = vpop.f32.mrf.mxu0
    %v205 = vadd.f32 %v138, %v204
    %206 = vdwg.mxu0
    %207 = vmatpush.msra.mxu0 %v134
    %208 = vmatpush.msra.mxu0 %v132
    %209 = vmatpush.msra.mxu0 %v130
    %210 = vmatpush.msra.mxu0 %v128
    %211 = vmatpush.msra.mxu0 %v126
    %212 = vmatpush.msra.mxu0 %v124
    %213 = vmatpush.msra.mxu0 %v122
    %214 = vmatpush.msra.mxu0 %v120
    %215 = vmatpush.msra.mxu0 %v118
    %216 = vmatpush.msra.mxu0 %v116
    %217 = vmatpush.msra.mxu0 %v114
    %218 = vmatpush.msra.mxu0 %v112
    %219 = vmatpush.msra.mxu0 %v110
    %220 = vmatpush.msra.mxu0 %v108
    %221 = vmatpush.msra.mxu0 %v106
    %222 = vmatpush.msra.mxu0 %v104
    %223 = vmatmul.f32.gmra.mxu0 %v144
    %v224 = vpop.f32.mrf.mxu0
    %v225 = vadd.f32 %v205, %v224
    %226 = vdwg.mxu0
    %v227 = vld [vmem:[#allocation5] sm:$0xff]
    %v228 = vld [vmem:[#allocation5 + $0x8] sm:$0xff]
    %v229 = vld [vmem:[#allocation5 + $0x10] sm:$0xff]
    %v230 = vld [vmem:[#allocation5 + $0x18] sm:$0xff]
    %v231 = vld [vmem:[#allocation5 + $0x20] sm:$0xff]
    %v232 = vld [vmem:[#allocation5 + $0x28] sm:$0xff]
    %v233 = vld [vmem:[#allocation5 + $0x30] sm:$0xff]
    %v234 = vld [vmem:[#allocation5 + $0x38] sm:$0xff]
    %v235 = vld [vmem:[#allocation5 + $0x40] sm:$0xff]
    %v236 = vld [vmem:[#allocation5 + $0x48] sm:$0xff]
    %v237 = vld [vmem:[#allocation5 + $0x50] sm:$0xff]
    %v238 = vld [vmem:[#allocation5 + $0x58] sm:$0xff]
    %v239 = vld [vmem:[#allocation5 + $0x60] sm:$0xff]
    %v240 = vld [vmem:[#allocation5 + $0x68] sm:$0xff]
    %v241 = vld [vmem:[#allocation5 + $0x70] sm:$0xff]
    %v242 = vld [vmem:[#allocation5 + $0x78] sm:$0xff]
    %v243 = vld [vmem:[%s4 + $0x2] sm:$0x1]
    %v245 = vperm.slane %v243, 0
    %247 = vmatpush.msra.mxu0 %v242
    %248 = vmatpush.msra.mxu0 %v241
    %249 = vmatpush.msra.mxu0 %v240
    %250 = vmatpush.msra.mxu0 %v239
    %251 = vmatpush.msra.mxu0 %v238
    %252 = vmatpush.msra.mxu0 %v237
    %253 = vmatpush.msra.mxu0 %v236
    %254 = vmatpush.msra.mxu0 %v235
    %255 = vmatpush.msra.mxu0 %v234
    %256 = vmatpush.msra.mxu0 %v233
    %257 = vmatpush.msra.mxu0 %v232
    %258 = vmatpush.msra.mxu0 %v231
    %259 = vmatpush.msra.mxu0 %v230
    %260 = vmatpush.msra.mxu0 %v229
    %261 = vmatpush.msra.mxu0 %v228
    %262 = vmatpush.msra.mxu0 %v227
    %263 = vmatmul.f32.gmra.mxu0 %v69
    %v264 = vpop.f32.mrf.mxu0
    %v265 = vadd.f32 %v245, %v264
    %266 = vdwg.mxu0
    %v267 = vld [vmem:[#allocation7] sm:$0xff]
    %v268 = vld [vmem:[#allocation7 + $0x8] sm:$0xff]
    %v269 = vld [vmem:[#allocation7 + $0x10] sm:$0xff]
    %v270 = vld [vmem:[#allocation7 + $0x18] sm:$0xff]
    %v271 = vld [vmem:[#allocation7 + $0x20] sm:$0xff]
    %v272 = vld [vmem:[#allocation7 + $0x28] sm:$0xff]
    %v273 = vld [vmem:[#allocation7 + $0x30] sm:$0xff]
    %v274 = vld [vmem:[#allocation7 + $0x38] sm:$0xff]
    %v275 = vld [vmem:[#allocation7 + $0x40] sm:$0xff]
    %v276 = vld [vmem:[#allocation7 + $0x48] sm:$0xff]
    %v277 = vld [vmem:[#allocation7 + $0x50] sm:$0xff]
    %v278 = vld [vmem:[#allocation7 + $0x58] sm:$0xff]
    %v279 = vld [vmem:[#allocation7 + $0x60] sm:$0xff]
    %v280 = vld [vmem:[#allocation7 + $0x68] sm:$0xff]
    %v281 = vld [vmem:[#allocation7 + $0x70] sm:$0xff]
    %v282 = vld [vmem:[#allocation7 + $0x78] sm:$0xff]
    %v283 = vld [vmem:[#allocation7 + $0x80] sm:$0xff]
    %v284 = vld [vmem:[#allocation7 + $0x88] sm:$0xff]
    %v285 = vld [vmem:[#allocation7 + $0x90] sm:$0xff]
    %v286 = vld [vmem:[#allocation7 + $0x98] sm:$0xff]
    %v287 = vld [vmem:[#allocation7 + $0xa0] sm:$0xff]
    %v288 = vld [vmem:[#allocation7 + $0xa8] sm:$0xff]
    %v289 = vld [vmem:[#allocation7 + $0xb0] sm:$0xff]
    %v290 = vld [vmem:[#allocation7 + $0xb8] sm:$0xff]
    %v291 = vld [vmem:[#allocation7 + $0xc0] sm:$0xff]
    %v292 = vld [vmem:[#allocation7 + $0xc8] sm:$0xff]
    %v293 = vld [vmem:[#allocation7 + $0xd0] sm:$0xff]
    %v294 = vld [vmem:[#allocation7 + $0xd8] sm:$0xff]
    %v295 = vld [vmem:[#allocation7 + $0xe0] sm:$0xff]
    %v296 = vld [vmem:[#allocation7 + $0xe8] sm:$0xff]
    %v297 = vld [vmem:[#allocation7 + $0xf0] sm:$0xff]
    %v298 = vld [vmem:[#allocation7 + $0xf8] sm:$0xff]
    %v299 = vld [vmem:[#allocation7 + $0x100] sm:$0xff]
    %v300 = vld [vmem:[#allocation7 + $0x108] sm:$0xff]
    %v301 = vld [vmem:[#allocation7 + $0x110] sm:$0xff]
    %v302 = vld [vmem:[#allocation7 + $0x118] sm:$0xff]
    %v303 = vld [vmem:[#allocation7 + $0x120] sm:$0xff]
    %v304 = vld [vmem:[#allocation7 + $0x128] sm:$0xff]
    %v305 = vld [vmem:[#allocation7 + $0x130] sm:$0xff]
    %v306 = vld [vmem:[#allocation7 + $0x138] sm:$0xff]
    %v307 = vld [vmem:[#allocation7 + $0x140] sm:$0xff]
    %v308 = vld [vmem:[#allocation7 + $0x148] sm:$0xff]
    %v309 = vld [vmem:[#allocation7 + $0x150] sm:$0xff]
    %v310 = vld [vmem:[#allocation7 + $0x158] sm:$0xff]
    %v311 = vld [vmem:[#allocation7 + $0x160] sm:$0xff]
    %v312 = vld [vmem:[#allocation7 + $0x168] sm:$0xff]
    %v313 = vld [vmem:[#allocation7 + $0x170] sm:$0xff]
    %v314 = vld [vmem:[#allocation7 + $0x178] sm:$0xff]
    %v315 = vld [vmem:[#allocation7 + $0x180] sm:$0xff]
    %v316 = vld [vmem:[#allocation7 + $0x188] sm:$0xff]
    %v317 = vld [vmem:[#allocation7 + $0x190] sm:$0xff]
    %v318 = vld [vmem:[#allocation7 + $0x198] sm:$0xff]
    %v319 = vld [vmem:[#allocation7 + $0x1a0] sm:$0xff]
    %v320 = vld [vmem:[#allocation7 + $0x1a8] sm:$0xff]
    %v321 = vld [vmem:[#allocation7 + $0x1b0] sm:$0xff]
    %v322 = vld [vmem:[#allocation7 + $0x1b8] sm:$0xff]
    %v323 = vld [vmem:[#allocation7 + $0x1c0] sm:$0xff]
    %v324 = vld [vmem:[#allocation7 + $0x1c8] sm:$0xff]
    %v325 = vld [vmem:[#allocation7 + $0x1d0] sm:$0xff]
    %v326 = vld [vmem:[#allocation7 + $0x1d8] sm:$0xff]
    %v327 = vld [vmem:[#allocation7 + $0x1e0] sm:$0xff]
    %v328 = vld [vmem:[#allocation7 + $0x1e8] sm:$0xff]
    %v329 = vld [vmem:[#allocation7 + $0x1f0] sm:$0xff]
    %v330 = vld [vmem:[#allocation7 + $0x1f8] sm:$0xff]
    %v331 = vld [vmem:[#allocation7 + $0x200] sm:$0xff]
    %v332 = vld [vmem:[#allocation7 + $0x208] sm:$0xff]
    %v333 = vld [vmem:[#allocation7 + $0x210] sm:$0xff]
    %v334 = vld [vmem:[#allocation7 + $0x218] sm:$0xff]
    %v335 = vld [vmem:[#allocation7 + $0x220] sm:$0xff]
    %v336 = vld [vmem:[#allocation7 + $0x228] sm:$0xff]
    %v337 = vld [vmem:[#allocation7 + $0x230] sm:$0xff]
    %v338 = vld [vmem:[#allocation7 + $0x238] sm:$0xff]
    %v339 = vld [vmem:[#allocation7 + $0x240] sm:$0xff]
    %v340 = vld [vmem:[#allocation7 + $0x248] sm:$0xff]
    %v341 = vld [vmem:[#allocation7 + $0x250] sm:$0xff]
    %v342 = vld [vmem:[#allocation7 + $0x258] sm:$0xff]
    %v343 = vld [vmem:[#allocation7 + $0x260] sm:$0xff]
    %v344 = vld [vmem:[#allocation7 + $0x268] sm:$0xff]
    %v345 = vld [vmem:[#allocation7 + $0x270] sm:$0xff]
    %v346 = vld [vmem:[#allocation7 + $0x278] sm:$0xff]
    %v347 = vld [vmem:[#allocation7 + $0x280] sm:$0xff]
    %v348 = vld [vmem:[#allocation7 + $0x288] sm:$0xff]
    %v349 = vld [vmem:[#allocation7 + $0x290] sm:$0xff]
    %v350 = vld [vmem:[#allocation7 + $0x298] sm:$0xff]
    %v351 = vld [vmem:[#allocation7 + $0x2a0] sm:$0xff]
    %v352 = vld [vmem:[#allocation7 + $0x2a8] sm:$0xff]
    %v353 = vld [vmem:[#allocation7 + $0x2b0] sm:$0xff]
    %v354 = vld [vmem:[#allocation7 + $0x2b8] sm:$0xff]
    %v355 = vld [vmem:[#allocation7 + $0x2c0] sm:$0xff]
    %v356 = vld [vmem:[#allocation7 + $0x2c8] sm:$0xff]
    %v357 = vld [vmem:[#allocation7 + $0x2d0] sm:$0xff]
    %v358 = vld [vmem:[#allocation7 + $0x2d8] sm:$0xff]
    %v359 = vld [vmem:[#allocation7 + $0x2e0] sm:$0xff]
    %v360 = vld [vmem:[#allocation7 + $0x2e8] sm:$0xff]
    %v361 = vld [vmem:[#allocation7 + $0x2f0] sm:$0xff]
    %v362 = vld [vmem:[#allocation7 + $0x2f8] sm:$0xff]
    %v363 = vld [vmem:[#allocation7 + $0x300] sm:$0xff]
    %v364 = vld [vmem:[#allocation7 + $0x308] sm:$0xff]
    %v365 = vld [vmem:[#allocation7 + $0x310] sm:$0xff]
    %v366 = vld [vmem:[#allocation7 + $0x318] sm:$0xff]
    %v367 = vld [vmem:[#allocation7 + $0x320] sm:$0xff]
    %v368 = vld [vmem:[#allocation7 + $0x328] sm:$0xff]
    %v369 = vld [vmem:[#allocation7 + $0x330] sm:$0xff]
    %v370 = vld [vmem:[#allocation7 + $0x338] sm:$0xff]
    %v371 = vld [vmem:[#allocation7 + $0x340] sm:$0xff]
    %v372 = vld [vmem:[#allocation7 + $0x348] sm:$0xff]
    %v373 = vld [vmem:[#allocation7 + $0x350] sm:$0xff]
    %v374 = vld [vmem:[#allocation7 + $0x358] sm:$0xff]
    %v375 = vld [vmem:[#allocation7 + $0x360] sm:$0xff]
    %v376 = vld [vmem:[#allocation7 + $0x368] sm:$0xff]
    %v377 = vld [vmem:[#allocation7 + $0x370] sm:$0xff]
    %v378 = vld [vmem:[#allocation7 + $0x378] sm:$0xff]
    %v379 = vld [vmem:[#allocation7 + $0x380] sm:$0xff]
    %v380 = vld [vmem:[#allocation7 + $0x388] sm:$0xff]
    %v381 = vld [vmem:[#allocation7 + $0x390] sm:$0xff]
    %v382 = vld [vmem:[#allocation7 + $0x398] sm:$0xff]
    %v383 = vld [vmem:[#allocation7 + $0x3a0] sm:$0xff]
    %v384 = vld [vmem:[#allocation7 + $0x3a8] sm:$0xff]
    %v385 = vld [vmem:[#allocation7 + $0x3b0] sm:$0xff]
    %v386 = vld [vmem:[#allocation7 + $0x3b8] sm:$0xff]
    %v387 = vld [vmem:[#allocation7 + $0x3c0] sm:$0xff]
    %v388 = vld [vmem:[#allocation7 + $0x3c8] sm:$0xff]
    %v389 = vld [vmem:[#allocation7 + $0x3d0] sm:$0xff]
    %v390 = vld [vmem:[#allocation7 + $0x3d8] sm:$0xff]
    %v391 = vld [vmem:[#allocation7 + $0x3e0] sm:$0xff]
    %v392 = vld [vmem:[#allocation7 + $0x3e8] sm:$0xff]
    %v393 = vld [vmem:[#allocation7 + $0x3f0] sm:$0xff]
    %v394 = vld [vmem:[#allocation7 + $0x3f8] sm:$0xff]
    %v395 = vld [vmem:[#allocation7 + $0x400] sm:$0xff]
    %v396 = vld [vmem:[#allocation7 + $0x408] sm:$0xff]
    %v397 = vld [vmem:[#allocation7 + $0x410] sm:$0xff]
    %v398 = vld [vmem:[#allocation7 + $0x418] sm:$0xff]
    %v399 = vld [vmem:[#allocation7 + $0x420] sm:$0xff]
    %v400 = vld [vmem:[#allocation7 + $0x428] sm:$0xff]
    %v401 = vld [vmem:[#allocation7 + $0x430] sm:$0xff]
    %v402 = vld [vmem:[#allocation7 + $0x438] sm:$0xff]
    %v403 = vld [vmem:[#allocation7 + $0x440] sm:$0xff]
    %v404 = vld [vmem:[#allocation7 + $0x448] sm:$0xff]
    %v405 = vld [vmem:[#allocation7 + $0x450] sm:$0xff]
    %v406 = vld [vmem:[#allocation7 + $0x458] sm:$0xff]
    %v407 = vld [vmem:[#allocation7 + $0x460] sm:$0xff]
    %v408 = vld [vmem:[#allocation7 + $0x468] sm:$0xff]
    %v409 = vld [vmem:[#allocation7 + $0x470] sm:$0xff]
    %v410 = vld [vmem:[#allocation7 + $0x478] sm:$0xff]
    %v411 = vld [vmem:[%s4 + $0x3] sm:$0x7]
    %v413 = vperm.slane %v411, 0
    %v414 = vperm.slane %v411, 1
    %v415 = vperm.slane %v411, 2
    %420 = vst [vmem:[#allocation1] ss:$4 sm:$0xff] %v70
    %v421 = vld.sshfl [vmem:[#allocation1] sm:$0xff pattern:$0x73625140]
    %v422 = vld.sshfl [vmem:[#allocation1 + $0x8] sm:$0xff pattern:$0x73625140]
    %v423 = vld.sshfl [vmem:[#allocation1 + $0x10] sm:$0xff pattern:$0x73625140]
    %427 = vmatpush.msra.mxu0 %v312
    %428 = vmatpush.msra.mxu0 %v309
    %429 = vmatpush.msra.mxu0 %v306
    %430 = vmatpush.msra.mxu0 %v303
    %431 = vmatpush.msra.mxu0 %v300
    %432 = vmatpush.msra.mxu0 %v297
    %433 = vmatpush.msra.mxu0 %v294
    %434 = vmatpush.msra.mxu0 %v291
    %435 = vmatpush.msra.mxu0 %v288
    %436 = vmatpush.msra.mxu0 %v285
    %437 = vmatpush.msra.mxu0 %v282
    %438 = vmatpush.msra.mxu0 %v279
    %439 = vmatpush.msra.mxu0 %v276
    %440 = vmatpush.msra.mxu0 %v273
    %441 = vmatpush.msra.mxu0 %v270
    %442 = vmatpush.msra.mxu0 %v267
    %443 = vmatmul.f32.gmra.mxu0 %v421
    %v444 = vpop.f32.mrf.mxu0
    %v445 = vadd.f32 %v413, %v444
    %446 = vdwg.mxu0
    %447 = vmatpush.msra.mxu0 %v360
    %448 = vmatpush.msra.mxu0 %v357
    %449 = vmatpush.msra.mxu0 %v354
    %450 = vmatpush.msra.mxu0 %v351
    %451 = vmatpush.msra.mxu0 %v348
    %452 = vmatpush.msra.mxu0 %v345
    %453 = vmatpush.msra.mxu0 %v342
    %454 = vmatpush.msra.mxu0 %v339
    %455 = vmatpush.msra.mxu0 %v336
    %456 = vmatpush.msra.mxu0 %v333
    %457 = vmatpush.msra.mxu0 %v330
    %458 = vmatpush.msra.mxu0 %v327
    %459 = vmatpush.msra.mxu0 %v324
    %460 = vmatpush.msra.mxu0 %v321
    %461 = vmatpush.msra.mxu0 %v318
    %462 = vmatpush.msra.mxu0 %v315
    %463 = vmatmul.f32.gmra.mxu0 %v422
    %v464 = vpop.f32.mrf.mxu0
    %v465 = vadd.f32 %v445, %v464
    %466 = vdwg.mxu0
    %467 = vmatpush.msra.mxu0 %v408
    %468 = vmatpush.msra.mxu0 %v405
    %469 = vmatpush.msra.mxu0 %v402
    %470 = vmatpush.msra.mxu0 %v399
    %471 = vmatpush.msra.mxu0 %v396
    %472 = vmatpush.msra.mxu0 %v393
    %473 = vmatpush.msra.mxu0 %v390
    %474 = vmatpush.msra.mxu0 %v387
    %475 = vmatpush.msra.mxu0 %v384
    %476 = vmatpush.msra.mxu0 %v381
    %477 = vmatpush.msra.mxu0 %v378
    %478 = vmatpush.msra.mxu0 %v375
    %479 = vmatpush.msra.mxu0 %v372
    %480 = vmatpush.msra.mxu0 %v369
    %481 = vmatpush.msra.mxu0 %v366
    %482 = vmatpush.msra.mxu0 %v363
    %483 = vmatmul.f32.gmra.mxu0 %v423
    %v484 = vpop.f32.mrf.mxu0
    %v485 = vadd.f32 %v465, %v484
    %486 = vdwg.mxu0
    %487 = vmatpush.msra.mxu0 %v313
    %488 = vmatpush.msra.mxu0 %v310
    %489 = vmatpush.msra.mxu0 %v307
    %490 = vmatpush.msra.mxu0 %v304
    %491 = vmatpush.msra.mxu0 %v301
    %492 = vmatpush.msra.mxu0 %v298
    %493 = vmatpush.msra.mxu0 %v295
    %494 = vmatpush.msra.mxu0 %v292
    %495 = vmatpush.msra.mxu0 %v289
    %496 = vmatpush.msra.mxu0 %v286
    %497 = vmatpush.msra.mxu0 %v283
    %498 = vmatpush.msra.mxu0 %v280
    %499 = vmatpush.msra.mxu0 %v277
    %500 = vmatpush.msra.mxu0 %v274
    %501 = vmatpush.msra.mxu0 %v271
    %502 = vmatpush.msra.mxu0 %v268
    %503 = vmatmul.f32.gmra.mxu0 %v421
    %v504 = vpop.f32.mrf.mxu0
    %v505 = vadd.f32 %v414, %v504
    %506 = vdwg.mxu0
    %507 = vmatpush.msra.mxu0 %v361
    %508 = vmatpush.msra.mxu0 %v358
    %509 = vmatpush.msra.mxu0 %v355
    %510 = vmatpush.msra.mxu0 %v352
    %511 = vmatpush.msra.mxu0 %v349
    %512 = vmatpush.msra.mxu0 %v346
    %513 = vmatpush.msra.mxu0 %v343
    %514 = vmatpush.msra.mxu0 %v340
    %515 = vmatpush.msra.mxu0 %v337
    %516 = vmatpush.msra.mxu0 %v334
    %517 = vmatpush.msra.mxu0 %v331
    %518 = vmatpush.msra.mxu0 %v328
    %519 = vmatpush.msra.mxu0 %v325
    %520 = vmatpush.msra.mxu0 %v322
    %521 = vmatpush.msra.mxu0 %v319
    %522 = vmatpush.msra.mxu0 %v316
    %523 = vmatmul.f32.gmra.mxu0 %v422
    %v524 = vpop.f32.mrf.mxu0
    %v525 = vadd.f32 %v505, %v524
    %526 = vdwg.mxu0
    %527 = vmatpush.msra.mxu0 %v409
    %528 = vmatpush.msra.mxu0 %v406
    %529 = vmatpush.msra.mxu0 %v403
    %530 = vmatpush.msra.mxu0 %v400
    %531 = vmatpush.msra.mxu0 %v397
    %532 = vmatpush.msra.mxu0 %v394
    %533 = vmatpush.msra.mxu0 %v391
    %534 = vmatpush.msra.mxu0 %v388
    %535 = vmatpush.msra.mxu0 %v385
    %536 = vmatpush.msra.mxu0 %v382
    %537 = vmatpush.msra.mxu0 %v379
    %538 = vmatpush.msra.mxu0 %v376
    %539 = vmatpush.msra.mxu0 %v373
    %540 = vmatpush.msra.mxu0 %v370
    %541 = vmatpush.msra.mxu0 %v367
    %542 = vmatpush.msra.mxu0 %v364
    %543 = vmatmul.f32.gmra.mxu0 %v423
    %v544 = vpop.f32.mrf.mxu0
    %v545 = vadd.f32 %v525, %v544
    %546 = vdwg.mxu0
    %547 = vmatpush.msra.mxu0 %v314
    %548 = vmatpush.msra.mxu0 %v311
    %549 = vmatpush.msra.mxu0 %v308
    %550 = vmatpush.msra.mxu0 %v305
    %551 = vmatpush.msra.mxu0 %v302
    %552 = vmatpush.msra.mxu0 %v299
    %553 = vmatpush.msra.mxu0 %v296
    %554 = vmatpush.msra.mxu0 %v293
    %555 = vmatpush.msra.mxu0 %v290
    %556 = vmatpush.msra.mxu0 %v287
    %557 = vmatpush.msra.mxu0 %v284
    %558 = vmatpush.msra.mxu0 %v281
    %559 = vmatpush.msra.mxu0 %v278
    %560 = vmatpush.msra.mxu0 %v275
    %561 = vmatpush.msra.mxu0 %v272
    %562 = vmatpush.msra.mxu0 %v269
    %563 = vmatmul.f32.gmra.mxu0 %v421
    %v564 = vpop.f32.mrf.mxu0
    %v565 = vadd.f32 %v415, %v564
    %566 = vdwg.mxu0
    %567 = vmatpush.msra.mxu0 %v362
    %568 = vmatpush.msra.mxu0 %v359
    %569 = vmatpush.msra.mxu0 %v356
    %570 = vmatpush.msra.mxu0 %v353
    %571 = vmatpush.msra.mxu0 %v350
    %572 = vmatpush.msra.mxu0 %v347
    %573 = vmatpush.msra.mxu0 %v344
    %574 = vmatpush.msra.mxu0 %v341
    %575 = vmatpush.msra.mxu0 %v338
    %576 = vmatpush.msra.mxu0 %v335
    %577 = vmatpush.msra.mxu0 %v332
    %578 = vmatpush.msra.mxu0 %v329
    %579 = vmatpush.msra.mxu0 %v326
    %580 = vmatpush.msra.mxu0 %v323
    %581 = vmatpush.msra.mxu0 %v320
    %582 = vmatpush.msra.mxu0 %v317
    %583 = vmatmul.f32.gmra.mxu0 %v422
    %v584 = vpop.f32.mrf.mxu0
    %v585 = vadd.f32 %v565, %v584
    %586 = vdwg.mxu0
    %587 = vmatpush.msra.mxu0 %v410
    %588 = vmatpush.msra.mxu0 %v407
    %589 = vmatpush.msra.mxu0 %v404
    %590 = vmatpush.msra.mxu0 %v401
    %591 = vmatpush.msra.mxu0 %v398
    %592 = vmatpush.msra.mxu0 %v395
    %593 = vmatpush.msra.mxu0 %v392
    %594 = vmatpush.msra.mxu0 %v389
    %595 = vmatpush.msra.mxu0 %v386
    %596 = vmatpush.msra.mxu0 %v383
    %597 = vmatpush.msra.mxu0 %v380
    %598 = vmatpush.msra.mxu0 %v377
    %599 = vmatpush.msra.mxu0 %v374
    %600 = vmatpush.msra.mxu0 %v371
    %601 = vmatpush.msra.mxu0 %v368
    %602 = vmatpush.msra.mxu0 %v365
    %603 = vmatmul.f32.gmra.mxu0 %v423
    %v604 = vpop.f32.mrf.mxu0
    %v605 = vadd.f32 %v585, %v604
    %606 = vdwg.mxu0
    %v613 = vrot.slane %v225, 6
    %v614 = vrot.slane %v265, 4
    %v615 = vrot.slane %v485, 2
    %v616 = vrot.slane %v605, 6
    %v617 = vrot.slane %v185, 4
    %v618 = vrot.slane %v225, 2
    %vm619 = vcmask 1041408
    %v620 = vsel %vm619, %v185, %v613
    %vm621 = vcmask 1045508
    %v622 = vsel %vm621, %v614, %v615
    %vm623 = vcmask 1043456
    %v624 = vsel %vm623, %v620, %v622
    %v625 = vsel %vm619, %v545, %v616
    %v626 = vsel %vm621, %v617, %v618
    %v627 = vsel %vm623, %v625, %v626
    %630 = vst [vmem:[#allocation8] sm:$0xff] %v624
    %631 = vst [vmem:[#allocation8 + $0x8] sm:$0xff] %v627
    %632 = vst [vmem:[#allocation8 + $0x10] sm:$0x3] %v265
    // Predicated region
    $region34: #{forward.1} parent=1 // pred_check
      _
    $region35: #{forward.1} parent=1 // pred_check_branch
      %634 = sbr.rel (0) target = $region37
    $region36: #{forward.1} parent=1 // pred_region
      %636 = vsyncadd [#allocation4], 0
      %s638 = sshll.u32 [#allocation8], 4
      %s639 = int_to_ptr.vmem [resolvable:$true] %s638
      %s640 = sshll.u32 %s5, 4
      %s641 = int_to_ptr.hbm [resolvable:$true] %s640
      %643 = dma.vmem_to_hbm [thread:$0]  %s639, 288, %s641, [#allocation4]
    $region37: #{forward.1} parent=1 // pred_fallthru
      _
    // Predicated region
    $region38: #{forward.1} parent=1 // pred_check
      _
    $region39: #{forward.1} parent=1 // pred_check_branch
      %645 = sbr.rel (0) target = $region41
    $region40: #{forward.1} parent=1 // pred_region
      %647 = dma.done [#allocation4], 288
    $region41: #{forward.1} parent=1 // pred_fallthru
      _
    %648 = vsyncpa [#allocation3], 1
    %649 = vsyncpa [#allocation6], 1
    %650 = vsyncpa [#allocation4], 1

</llo_original>
